<compile_context>
chip_gen: v7x
topology: tpu7x:2x2x1
jax: 0.10.0
libtpu: 0.0.40
codegen_flags: <defaults>
</compile_context>

<pallas_src>
import functools
import math

import jax
import jax.numpy as jnp
from jax import lax
from jax.experimental import pallas as pl
from jax.experimental.pallas import tpu as pltpu

LANES = 128
_DEFAULT_TILE_ROWS = 8192    # (8192,128) f32 = 4 MiB/tile; double-buffered pair << 32 MiB
_CHUNK_ROWS = 64             # 64x128 f32 = 8 vregs per intermediate -> no spills
_SINGLE_TILE_MAX_ROWS = 512  # below this, splitting across TensorCores isn't worth it


def _round_up(x, m):
    return (x + m - 1) // m * m


def _focal_bce(x, lab, alpha, gamma, float_labels):
    """Elementwise focal BCE-with-logits. x is f32; lab is its upstream dtype."""
    is_pos = lab == 1
    alpha_t = jnp.where(is_pos, jnp.float32(alpha), jnp.float32(1.0 - alpha))

    if float_labels:
        # General path (soft targets): exact BCEWithLogits for arbitrary y.
        e = jnp.exp(-jnp.abs(x))                   # exp(-|x|) in (0, 1]
        lg = jnp.log1p(e)
        d = 1.0 + e
        r = pl.reciprocal(d, approx=True)          # EUP slot (has slack)
        r = r * (2.0 - d * r)                      # one Newton step -> f32 accurate
        sig = jnp.where(x >= 0.0, r, e * r)        # == sigmoid(x)
        one_m_pt = jnp.where(is_pos, 1.0 - sig, sig)
        ce = jnp.maximum(x, 0.0) - x * lab.astype(jnp.float32) + lg
    else:
        # Binary integer labels: fold the label select into the logit sign.
        # TODO(synk): integer labels are assumed binary {0,1} (as the module's
        # `label == 1` / long-dtype docstring implies).
        z = jnp.where(is_pos, -x, x)
        e = jnp.exp(-jnp.abs(z))                   # == exp(-|x|)
        lg = jnp.log1p(e)
        d = 1.0 + e
        r = pl.reciprocal(d, approx=True)
        r = r * (2.0 - d * r)
        one_m_pt = jnp.where(z >= 0.0, r, e * r)   # == sigmoid(z) == 1 - pt
        ce = jnp.maximum(z, 0.0) + lg              # == softplus(z) == BCE (y in {0,1})

    g = float(gamma)
    if g == int(g) and 1 <= int(g) <= 4:
        mod = one_m_pt
        for _ in range(int(g) - 1):                # pow -> repeated multiply (VPU only)
            mod = mod * one_m_pt
    elif g == 0.0:
        return alpha_t * ce
    else:
        mod = jnp.power(one_m_pt, jnp.float32(g))
    return alpha_t * mod * ce


def _heatmap_loss_kernel(logits_ref, label_ref, out_ref, *,
                         chunk_rows, num_chunks, num_tiles, mask_last,
                         valid_in_last, alpha, gamma, float_labels):
    def tile_sum(masked):
        if masked:
            row = lax.broadcasted_iota(jnp.int32, (chunk_rows, LANES), 0)
            col = lax.broadcasted_iota(jnp.int32, (chunk_rows, LANES), 1)
            eidx = row * LANES + col               # element index within one chunk

        def chunk_partial(x, lab, thr):
            loss = _focal_bce(x, lab, alpha, gamma, float_labels)
            if thr is not None:
                # Zero out lane-padding / out-of-bounds garbage rows (select is
                # safe even if the garbage math produced NaN/Inf).
                loss = jnp.where(eidx < thr, loss, 0.0)
            # (ch,128) -> (ch//8, 8, 128) -> sum leading dim: pure vreg adds,
            # leaving a lane-dense (8,128) partial (no cross-lane XLU reduce).
            return loss.reshape(-1, 8, LANES).sum(axis=0)

        if num_chunks == 1:
            thr = valid_in_last if masked else None
            return chunk_partial(logits_ref[...].astype(jnp.float32),
                                 label_ref[...], thr)

        def body(c, acc):
            r0 = pl.multiple_of(c * chunk_rows, chunk_rows)
            x = logits_ref[pl.ds(r0, chunk_rows), :].astype(jnp.float32)
            lab = label_ref[pl.ds(r0, chunk_rows), :]
            thr = (valid_in_last - c * (chunk_rows * LANES)) if masked else None
            return acc + chunk_partial(x, lab, thr)

        # Rolled loop: each body already has 8-way vreg ILP; unrolling would
        # only raise register pressure back into spills.
        return lax.fori_loop(0, num_chunks, body,
                             jnp.zeros((8, LANES), jnp.float32))

    if not mask_last:
        out_ref[0] = tile_sum(False)
    elif num_tiles == 1:
        out_ref[0] = tile_sum(True)
    else:
        pid = pl.program_id(0)

        @pl.when(pid != num_tiles - 1)
        def _():
            out_ref[0] = tile_sum(False)           # interior tiles: no mask work

        @pl.when(pid == num_tiles - 1)
        def _():
            out_ref[0] = tile_sum(True)            # only last tile pays for masking


def heatmap_loss(logits, label, *, alpha=0.25, gamma=2, reduction="mean",
                 tile_rows=_DEFAULT_TILE_ROWS):
    """Pallas TPU implementation of HeatmapLoss.forward (reduction='mean')."""
    assert logits.shape == label.shape
    assert reduction == "mean"  # TODO(synk): module only constructs 'mean'.

    total = math.prod(logits.shape)
    rows_needed = -(-total // LANES)
    pad = rows_needed * LANES - total

    # ---- tiling -----------------------------------------------------------
    if rows_needed <= _SINGLE_TILE_MAX_ROWS:
        tr = _round_up(rows_needed, 8)
        if tr > _CHUNK_ROWS:
            tr = _round_up(tr, _CHUNK_ROWS)        # keep chunk | tile
        ch = min(tr, _CHUNK_ROWS)
    else:
        # >= 2 tiles, preferably even, so ("parallel",) feeds both v7x TCs.
        nt = max(2, -(-rows_needed // tile_rows))
        if nt % 2:
            nt += 1
        tr = _round_up(-(-rows_needed // nt), _CHUNK_ROWS)
        ch = _CHUNK_ROWS
    num_tiles = -(-rows_needed // tr)
    num_chunks = tr // ch

    covered = num_tiles * tr * LANES
    mask_last = covered > total                    # ragged last block and/or lane pad
    valid_in_last = total - (num_tiles - 1) * tr * LANES

    # ---- input staging (copy-free where possible) ---------------------------
    lab = label
    if lab.dtype == jnp.bool_:
        lab = lab.astype(jnp.int8)                 # layout-safe, 1 byte either way
    float_labels = bool(jnp.issubdtype(lab.dtype, jnp.floating))

    logits_flat = logits.reshape(-1)               # reshape only, no copy
    label_flat = lab.reshape(-1)
    if pad:                                        # pad only to a multiple of 128 lanes
        logits_flat = jnp.pad(logits_flat, (0, pad))
        label_flat = jnp.pad(label_flat, (0, pad))
    logits2d = logits_flat.reshape(rows_needed, LANES)
    label2d = label_flat.reshape(rows_needed, LANES)

    kernel = functools.partial(
        _heatmap_loss_kernel,
        chunk_rows=ch, num_chunks=num_chunks, num_tiles=num_tiles,
        mask_last=mask_last, valid_in_last=valid_in_last,
        alpha=float(alpha), gamma=gamma, float_labels=float_labels)

    partials = pl.pallas_call(
        kernel,
        out_shape=jax.ShapeDtypeStruct((num_tiles, 8, LANES), jnp.float32),
        grid=(num_tiles,),
        in_specs=[
            pl.BlockSpec((tr, LANES), lambda i: (i, 0)),
            pl.BlockSpec((tr, LANES), lambda i: (i, 0)),
        ],
        out_specs=pl.BlockSpec((1, 8, LANES), lambda i: (i, 0, 0)),
        compiler_params=pltpu.CompilerParams(
            dimension_semantics=("parallel",),      # independent tiles -> megacore
            vmem_limit_bytes=32 * 1024 * 1024),     # covers v5e's 16 MiB scoped default
    )(logits2d, label2d)

    # Tiny final reduce over (num_tiles, 8, 128) f32, then mean normalization.
    return jnp.sum(partials) / jnp.float32(total)


def _reference_loss(logits, label, alpha=0.25, gamma=2):
    """Pure-JAX reference mirroring the PyTorch module."""
    x = logits.astype(jnp.float32)
    y = label.astype(jnp.float32)
    is_pos = label == 1
    alpha_t = jnp.where(is_pos, alpha, 1.0 - alpha)
    probs = jax.nn.sigmoid(x)
    pt = jnp.where(is_pos, probs, 1.0 - probs)
    ce = jnp.maximum(x, 0.0) - x * y + jnp.log1p(jnp.exp(-jnp.abs(x)))
    loss = alpha_t * (1.0 - pt) ** gamma * ce
    return jnp.mean(loss)


if __name__ == "__main__":
    key = jax.random.PRNGKey(0)
    k1, k2 = jax.random.split(key)

    N, C, H, W = 2, 4, 16, 16  # small NCHW heatmap shapes
    logits = jax.random.normal(k1, (N, C, H, W), dtype=jnp.float32) * 3.0
    # "long"-typed binary heatmap labels
    label = (jax.random.uniform(k2, (N, C, H, W)) > 0.9).astype(jnp.int32)

    out = heatmap_loss(logits, label, alpha=0.25, gamma=2, reduction="mean")
    out = jax.block_until_ready(out)

    ref = _reference_loss(logits, label)
    assert jnp.allclose(out, ref, rtol=1e-5, atol=1e-6), (out, ref)

    print("KERNEL_OK")
</pallas_src>

<mosaic_0001>
module attributes {stable_mosaic.version = 11 : i64} {
  func.func @_heatmap_loss_kernel(%arg0: i32, %arg1: memref<16x128xf32, #tpu.memory_space<vmem>>, %arg2: memref<16x128xi32, #tpu.memory_space<vmem>>, %arg3: memref<1x8x128xf32, #tpu.memory_space<vmem>>) attributes {dimension_semantics = [#tpu.dimension_semantics<parallel>], iteration_bounds = array<i64: 1>, scalar_prefetch = 0 : i64, scratch_operands = 0 : i64, tpu.core_type = #tpu.core_type<tc>, window_params = [{transform_indices = @transform_0, window_bounds = array<i64: 16, 128>}, {transform_indices = @transform_1, window_bounds = array<i64: 16, 128>}, {transform_indices = @transform_2, window_bounds = array<i64: 1, 8, 128>}]} {
    %c0 = arith.constant 0 : index
    %c0_0 = arith.constant 0 : index
    %0 = vector.load %arg1[%c0, %c0_0] : memref<16x128xf32, #tpu.memory_space<vmem>>, vector<16x128xf32>
    %c0_1 = arith.constant 0 : index
    %c0_2 = arith.constant 0 : index
    %1 = vector.load %arg2[%c0_1, %c0_2] : memref<16x128xi32, #tpu.memory_space<vmem>>, vector<16x128xi32>
    %c1_i32 = arith.constant 1 : i32
    %2 = vector.broadcast %c1_i32 : i32 to vector<16x128xi32>
    %3 = arith.cmpi eq, %1, %2 : vector<16x128xi32>
    %cst = arith.constant 2.500000e-01 : f32
    %cst_3 = arith.constant 7.500000e-01 : f32
    %4 = vector.broadcast %cst : f32 to vector<16x128xf32>
    %5 = vector.broadcast %cst_3 : f32 to vector<16x128xf32>
    %6 = arith.select %3, %4, %5 : vector<16x128xi1>, vector<16x128xf32>
    %cst_4 = arith.constant 0.000000e+00 : f32
    %7 = vector.broadcast %cst_4 : f32 to vector<16x128xf32>
    %8 = arith.subf %7, %0 : vector<16x128xf32>
    %9 = arith.select %3, %8, %0 : vector<16x128xi1>, vector<16x128xf32>
    %10 = math.absf %9 : vector<16x128xf32>
    %cst_5 = arith.constant 0.000000e+00 : f32
    %11 = vector.broadcast %cst_5 : f32 to vector<16x128xf32>
    %12 = arith.subf %11, %10 : vector<16x128xf32>
    %13 = math.exp %12 : vector<16x128xf32>
    %14 = math.log1p %13 : vector<16x128xf32>
    %cst_6 = arith.constant 1.000000e+00 : f32
    %15 = vector.broadcast %cst_6 : f32 to vector<16x128xf32>
    %16 = arith.addf %15, %13 : vector<16x128xf32>
    %17 = tpu.reciprocal %16 {approx = true} : vector<16x128xf32> -> vector<16x128xf32>
    %18 = arith.mulf %16, %17 : vector<16x128xf32>
    %cst_7 = arith.constant 2.000000e+00 : f32
    %19 = vector.broadcast %cst_7 : f32 to vector<16x128xf32>
    %20 = arith.subf %19, %18 : vector<16x128xf32>
    %21 = arith.mulf %17, %20 : vector<16x128xf32>
    %cst_8 = arith.constant 0.000000e+00 : f32
    %22 = vector.broadcast %cst_8 : f32 to vector<16x128xf32>
    %23 = arith.cmpf oge, %9, %22 : vector<16x128xf32>
    %24 = arith.mulf %13, %21 : vector<16x128xf32>
    %25 = arith.select %23, %21, %24 : vector<16x128xi1>, vector<16x128xf32>
    %cst_9 = arith.constant 0.000000e+00 : f32
    %26 = vector.broadcast %cst_9 : f32 to vector<16x128xf32>
    %27 = arith.maximumf %9, %26 : vector<16x128xf32>
    %28 = arith.addf %27, %14 : vector<16x128xf32>
    %29 = arith.mulf %25, %25 : vector<16x128xf32>
    %30 = arith.mulf %6, %29 : vector<16x128xf32>
    %31 = arith.mulf %30, %28 : vector<16x128xf32>
    %32 = vector.shape_cast %31 : vector<16x128xf32> to vector<2x8x128xf32>
    %cst_10 = arith.constant dense<0.000000e+00> : vector<8x128xf32>
    %33 = vector.multi_reduction <add>, %32, %cst_10 [0] : vector<2x8x128xf32> to vector<8x128xf32>
    %c0_11 = arith.constant 0 : index
    %c0_12 = arith.constant 0 : index
    %c0_13 = arith.constant 0 : index
    %34 = vector.load %arg3[%c0_11, %c0_12, %c0_13] : memref<1x8x128xf32, #tpu.memory_space<vmem>>, vector<1x8x128xf32>
    %35 = vector.shape_cast %34 : vector<1x8x128xf32> to vector<8x128xf32>
    %36 = vector.shape_cast %33 : vector<8x128xf32> to vector<1x8x128xf32>
    tpu.vector_store %arg3[%c0_11, %c0_12, %c0_13], %36 {strides = array<i32>} : memref<1x8x128xf32, #tpu.memory_space<vmem>>, vector<1x8x128xf32>,
    return
  }
  func.func @transform_0(%arg0: i32) -> (i32, i32) {
    %c0_i32 = arith.constant 0 : i32
    %c0_i32_0 = arith.constant 0 : i32
    return %arg0, %c0_i32 : i32, i32
  }
  func.func @transform_1(%arg0: i32) -> (i32, i32) {
    %c0_i32 = arith.constant 0 : i32
    %c0_i32_0 = arith.constant 0 : i32
    return %arg0, %c0_i32 : i32, i32
  }
  func.func @transform_2(%arg0: i32) -> (i32, i32, i32) {
    %c0_i32 = arith.constant 0 : i32
    %c0_i32_0 = arith.constant 0 : i32
    %c0_i32_1 = arith.constant 0 : i32
    return %arg0, %c0_i32, %c0_i32_0 : i32, i32, i32
  }
}

</mosaic_0001>

<llo_original>
// kernel: tpu_custom_call.1
$region0: #{tpu_custom_call.1}
  #allocation0 [shape = 'u32[]', space=smem, size = 0x4, offset = 0x4, fixed_abs, tag = 'smem constant byte address 0x4 - core index']
  #allocation1 [shape = 'u32[144,128]{1,0:T(1,128)}', space=vmem, size = 0x12000, scoped, tag = 'internal scratch']
  %s0 = inlined_call_operand.hbm [shape: f32[16,128], index: 0, kind: input, shape index: {}]
  %s1 = inlined_call_operand.hbm [shape: s32[16,128], index: 1, kind: input, shape index: {}]
  %s2 = inlined_call_operand.hbm [shape: f32[1,8,128], index: 2, kind: output, shape index: {}]
  %s3 = sld [smem:[#allocation0]]
  $region26: #{tpu_custom_call.1} parent=0
    _
  %s5 = ssub.s32 1, %s3
  %s6 = scalar_select 0, %s5, %s3
  $region1: #{tpu_custom_call.1} parent=0
    #allocation2 [shape = 'u8[8192]{0}', space=vmem, size = 0x2000, scoped, tag = 'input window, operand 0, single buffered']
    #allocation3 [shape = 's32[1]{0}', space=sflag, size = 0x4, scoped, tag = 'scoped memory for tpu_custom_call.1']
    #allocation4 [shape = 's32[1]{0}', space=sflag, size = 0x4, scoped, tag = 'scoped memory for tpu_custom_call.1']
    #allocation5 [shape = 'u8[8192]{0}', space=vmem, size = 0x2000, scoped, tag = 'input window, operand 1, single buffered']
    #allocation6 [shape = 's32[1]{0}', space=sflag, size = 0x4, scoped, tag = 'scoped memory for tpu_custom_call.1']
    #allocation7 [shape = 'u8[4096]{0}', space=vmem, size = 0x1000, scoped, tag = 'output window, operand 0, single buffered']
    %7 = vsyncpa [#allocation3], 0
    %8 = vsyncpa [#allocation6], 0
    %9 = vsyncpa [#allocation4], 0
    // Predicated region
    $region2: #{tpu_custom_call.1} parent=1 // pred_check
      _
    $region3: #{tpu_custom_call.1} parent=1 // pred_check_branch
      %11 = sbr.rel (0) target = $region5
    $region4: #{tpu_custom_call.1} parent=1 // pred_region
      %s13 = ssub.s32 256, 256
      %14 = vsyncadd [#allocation3], %s13
      %s15 = sshll.u32 [#allocation2], 4
      %s16 = int_to_ptr.vmem [resolvable:$true] %s15
      %21 = dma.hbm_to_vmem [thread:$0]  %s0, 256, %s16, [#allocation3], 128, 128, 8
    $region5: #{tpu_custom_call.1} parent=1 // pred_fallthru
      _
    // Predicated region
    $region6: #{tpu_custom_call.1} parent=1 // pred_check
      _
    $region7: #{tpu_custom_call.1} parent=1 // pred_check_branch
      %23 = sbr.rel (0) target = $region9
    $region8: #{tpu_custom_call.1} parent=1 // pred_region
      %s25 = ssub.s32 256, 256
      %26 = vsyncadd [#allocation6], %s25
      %s27 = sshll.u32 [#allocation5], 4
      %s28 = int_to_ptr.vmem [resolvable:$true] %s27
      %33 = dma.hbm_to_vmem [thread:$0]  %s1, 256, %s28, [#allocation6], 128, 128, 8
    $region9: #{tpu_custom_call.1} parent=1 // pred_fallthru
      _
    // Predicated region
    $region10: #{tpu_custom_call.1} parent=1 // pred_check
      _
    $region11: #{tpu_custom_call.1} parent=1 // pred_check_branch
      %35 = sbr.rel (0) target = $region13
    $region12: #{tpu_custom_call.1} parent=1 // pred_region
      %36 = dma.done [#allocation3], 256
    $region13: #{tpu_custom_call.1} parent=1 // pred_fallthru
      _
    // Predicated region
    $region14: #{tpu_custom_call.1} parent=1 // pred_check
      _
    $region15: #{tpu_custom_call.1} parent=1 // pred_check_branch
      %38 = sbr.rel (0) target = $region17
    $region16: #{tpu_custom_call.1} parent=1 // pred_region
      %39 = dma.done [#allocation6], 256
    $region17: #{tpu_custom_call.1} parent=1 // pred_fallthru
      _
    %v40 = vld [vmem:[#allocation2] sm:$0xff]
    %v41 = vld [vmem:[#allocation2 + $0x8] sm:$0xff]
    %v42 = vld [vmem:[#allocation5] sm:$0xff]
    %v43 = vld [vmem:[#allocation5 + $0x8] sm:$0xff]
    %vm44 = vcmp.eq.s32.totalorder %v42, 1
    %vm45 = vcmp.eq.s32.totalorder %v43, 1
    %v46 = vsel %vm44, 0.25, 0.75
    %v47 = vsel %vm45, 0.25, 0.75
    %v48 = vsub.f32 0.0, %v40
    %v49 = vsub.f32 0.0, %v41
    %v50 = vsel %vm44, %v48, %v40
    %v51 = vsel %vm45, %v49, %v41
    %v52 = vand.u32 2147483647, %v50
    %v53 = vand.u32 2147483647, %v51
    %v54 = vsub.f32 0.0, %v52
    %v55 = vsub.f32 0.0, %v53
    %v56 = vmul.f32 %v54, 1.442695
    %v57 = vpow.pop %v56
    %v58 = vmul.f32 %v55, 1.442695
    %v59 = vpow.pop %v58
    %v60 = vadd.f32 %v57, 1.0
    %v61 = vlog2.pop %v60
    %v62 = vmul.f32 %v61, 0.6931472
    %v63 = vmul.f32 -0.5, %v57
    %v64 = vadd.f32 %v63, 1.0
    %v65 = vmul.f32 %v64, %v57
    %v66 = vand.u32 2147483647, %v57
    %vm67 = vcmp.lt.f32.partialorder %v66, 0.0004427343
    %v68 = vsel %vm67, %v65, %v62
    %v69 = vadd.f32 %v59, 1.0
    %v70 = vlog2.pop %v69
    %v71 = vmul.f32 %v70, 0.6931472
    %v72 = vmul.f32 -0.5, %v59
    %v73 = vadd.f32 %v72, 1.0
    %v74 = vmul.f32 %v73, %v59
    %v75 = vand.u32 2147483647, %v59
    %vm76 = vcmp.lt.f32.partialorder %v75, 0.0004427343
    %v77 = vsel %vm76, %v74, %v71
    %v78 = vadd.f32 %v57, 1.0
    %v79 = vadd.f32 %v59, 1.0
    %v80 = vrcp.pop %v78
    %v81 = vrcp.pop %v79
    %v82 = vmul.f32 %v78, %v80
    %v83 = vmul.f32 %v79, %v81
    %v84 = vsub.f32 2.0, %v82
    %v85 = vsub.f32 2.0, %v83
    %v86 = vmul.f32 %v80, %v84
    %v87 = vmul.f32 %v81, %v85
    %vm88 = vcmp.ge.f32.partialorder %v50, 0.0
    %vm89 = vcmp.ge.f32.partialorder %v51, 0.0
    %v90 = vmul.f32 %v57, %v86
    %v91 = vmul.f32 %v59, %v87
    %v92 = vsel %vm88, %v86, %v90
    %v93 = vsel %vm89, %v87, %v91
    %v94 = vmax.f32 %v50, 0.0
    %v95 = vmax.f32 %v51, 0.0
    %v96 = vadd.f32 %v94, %v68
    %v97 = vadd.f32 %v95, %v77
    %v98 = vmul.f32 %v92, %v92
    %v99 = vmul.f32 %v93, %v93
    %v100 = vmul.f32 %v46, %v98
    %v101 = vmul.f32 %v47, %v99
    %v102 = vmul.f32 %v100, %v96
    %v103 = vmul.f32 %v101, %v97
    %v104 = vadd.f32 %v102, %v103
    %105 = vst [vmem:[#allocation7] sm:$0xff] %v104
    // Predicated region
    $region18: #{tpu_custom_call.1} parent=1 // pred_check
      _
    $region19: #{tpu_custom_call.1} parent=1 // pred_check_branch
      %107 = sbr.rel (0) target = $region21
    $region20: #{tpu_custom_call.1} parent=1 // pred_region
      %s109 = ssub.s32 128, 128
      %110 = vsyncadd [#allocation4], %s109
      %s112 = sshll.u32 [#allocation7], 4
      %s113 = int_to_ptr.vmem [resolvable:$true] %s112
      %115 = dma.vmem_to_hbm [thread:$0]  %s113, 128, %s2, [#allocation4]
    $region21: #{tpu_custom_call.1} parent=1 // pred_fallthru
      _
    // Predicated region
    $region22: #{tpu_custom_call.1} parent=1 // pred_check
      _
    $region23: #{tpu_custom_call.1} parent=1 // pred_check_branch
      %117 = sbr.rel (0) target = $region25
    $region24: #{tpu_custom_call.1} parent=1 // pred_region
      %118 = dma.done [#allocation4], 128
    $region25: #{tpu_custom_call.1} parent=1 // pred_fallthru
      _
    %119 = vsyncpa [#allocation3], 1
    %120 = vsyncpa [#allocation6], 1
    %121 = vsyncpa [#allocation4], 1

</llo_original>
